<compile_context>
chip_gen: v7x
topology: tpu7x:2x2x1
jax: 0.10.0
libtpu: 0.0.40
codegen_flags: <defaults>
</compile_context>

<pallas_src>
import jax
import jax.numpy as jnp
from jax.experimental import pallas as pl
from jax.experimental.pallas import tpu as pltpu


def _round_up(x, m):
    return (x + m - 1) // m * m


def fusion_kernel(wc_ref, img_ref, b_ref, out_ref):
    # wc_ref : (1, O, C) f32  -- 1x1-conv weight folded into the color embedding
    # img_ref: (1, C, T) f32  -- image tile, T multiple of 128 (last tile store-masked)
    # b_ref  : (O, 1)    f32  -- conv bias
    # out_ref: (1, O, T) f32
    y = jnp.dot(wc_ref[0], img_ref[0], preferred_element_type=jnp.float32)  # (O, T)
    out_ref[0] = (y + b_ref[...]).astype(out_ref.dtype)


def fusion_forward(image_embedding, color_embedding, conv_w, conv_b,
                   *, vmem_tile_bytes=8 * 1024 * 1024):
    """image_embedding: (B, C, H, W), color_embedding: (B, K, C),
    conv_w: (O, K, 1, 1), conv_b: (O,)  ->  (B, O, H, W) float32."""
    B, C, H, W = image_embedding.shape
    Bk, K, Ck = color_embedding.shape
    assert C == Ck, f"channel mismatch: image C={C}, color C={Ck}"
    assert B == Bk, f"batch mismatch: {B} vs {Bk}"
    O = conv_w.shape[0]
    assert conv_w.shape[1] == K
    HW = H * W

    w2 = conv_w.reshape(O, K).astype(jnp.float32)
    b2 = conv_b.reshape(O, 1).astype(jnp.float32)

    # Fold the 1x1 conv weight into the color embedding (tiny: B*O*K*C flops, plain XLA).
    wc = jnp.einsum('ok,bkc->boc', w2, color_embedding.astype(jnp.float32))  # (B, O, C)

    # Image stream stays f32; the reshape is metadata-only (no extra HBM pass).
    img = image_embedding.reshape(B, C, HW)
    itemsize = img.dtype.itemsize

    # Lane-dense HW tile derived from a per-buffer VMEM budget; multiple of 128,
    # clamped to the (rounded-up) spatial extent.
    t_hw = max(128, (vmem_tile_bytes // (C * itemsize)) // 128 * 128)
    t_hw = min(t_hw, _round_up(HW, 128))
    n_t = pl.cdiv(HW, t_hw)
    # v7x has 2 TensorCores: make sure the "parallel" grid has enough steps to occupy
    # both; trade a smaller tile for 2-TC occupancy (no-op on v5e/v6e-sized grids).
    while B * n_t < 4 and t_hw > 256:
        t_hw = _round_up(max(128, t_hw // 2), 128)
        n_t = pl.cdiv(HW, t_hw)

    # VMEM from actual live buffers: double-buffered image tile + output tile + wc + bias.
    vmem_bytes = 2 * (C * t_hw + O * t_hw + O * C + O) * itemsize + (4 << 20)
    vmem_bytes = int(min(max(vmem_bytes, 8 << 20), 64 << 20))

    cost = pl.CostEstimate(
        flops=2 * B * O * C * HW,
        transcendentals=0,
        bytes_accessed=(B * C * HW + B * O * HW + B * O * C + O) * itemsize,
    )

    out = pl.pallas_call(
        fusion_kernel,
        out_shape=jax.ShapeDtypeStruct((B, O, HW), jnp.float32),
        grid_spec=pltpu.PrefetchScalarGridSpec(
            num_scalar_prefetch=0,
            grid=(B, n_t),
            in_specs=[
                # wc: same block across the HW axis -> fetched once per batch step
                pl.BlockSpec((1, O, C), lambda b, h: (b, 0, 0)),
                # image tile: (C, t_hw) slab per grid step, double-buffered by Pallas
                pl.BlockSpec((1, C, t_hw), lambda b, h: (b, 0, h)),
                # bias: tiny (O,1) VMEM block, reused every step
                pl.BlockSpec((O, 1), lambda b, h: (0, 0)),
            ],
            out_specs=pl.BlockSpec((1, O, t_hw), lambda b, h: (b, 0, h)),
        ),
        compiler_params=pltpu.CompilerParams(
            dimension_semantics=("parallel", "parallel"),
            vmem_limit_bytes=vmem_bytes,
        ),
        cost_estimate=cost,
    )(wc, img, b2)

    return out.reshape(B, O, H, W)


if __name__ == "__main__":
    key = jax.random.PRNGKey(0)
    k1, k2, k3, k4 = jax.random.split(key, 4)

    # Small shapes consistent with the module: K is fixed to 100, O to 2 by the conv.
    B, C, H, W, K, O = 2, 32, 16, 16, 100, 2

    image_embedding = jax.random.normal(k1, (B, C, H, W), dtype=jnp.float32)
    color_embedding = jax.random.normal(k2, (B, K, C), dtype=jnp.float32)

    # Deterministic nn.Conv2d(100, 2, kernel_size=1) style init (uniform +-1/sqrt(fan_in)).
    bound = 1.0 / (K ** 0.5)
    conv_w = jax.random.uniform(k3, (O, K, 1, 1), jnp.float32, -bound, bound)
    conv_b = jax.random.uniform(k4, (O,), jnp.float32, -bound, bound)

    y = fusion_forward(image_embedding, color_embedding, conv_w, conv_b)
    jax.block_until_ready(y)
    assert y.shape == (B, O, H, W)

    # Reference: full f32 module semantics.
    w2 = conv_w.reshape(O, K)
    f_hat = jnp.einsum('bkc,bchw->bkhw', color_embedding, image_embedding)
    y_ref = jnp.einsum('ok,bkhw->bohw', w2, f_hat) + conv_b.reshape(1, O, 1, 1)
    # Tolerance covers the MXU's default f32-matmul precision on TPU.
    max_err = float(jnp.max(jnp.abs(y - y_ref)))
    assert jnp.allclose(y, y_ref, atol=1.5e-1, rtol=5e-2), max_err

    print("KERNEL_OK")
</pallas_src>

<mosaic_0001>
module attributes {stable_mosaic.version = 11 : i64} {
  func.func @fusion_kernel(%arg0: i32, %arg1: i32, %arg2: memref<1x2x32xf32, #tpu.memory_space<vmem>>, %arg3: memref<1x32x256xf32, #tpu.memory_space<vmem>>, %arg4: memref<2x1xf32, #tpu.memory_space<vmem>>, %arg5: memref<1x2x256xf32, #tpu.memory_space<vmem>>) attributes {dimension_semantics = [#tpu.dimension_semantics<parallel>, #tpu.dimension_semantics<parallel>], iteration_bounds = array<i64: 2, 1>, scalar_prefetch = 0 : i64, scratch_operands = 0 : i64, tpu.core_type = #tpu.core_type<tc>, window_params = [{transform_indices = @transform_0, window_bounds = array<i64: 1, 2, 32>}, {transform_indices = @transform_1, window_bounds = array<i64: 1, 32, 256>}, {pipeline_mode = #tpu.pipeline_mode<synchronous>, transform_indices = @transform_2, window_bounds = array<i64: 2, 1>}, {transform_indices = @transform_3, window_bounds = array<i64: 1, 2, 256>}]} {
    %c0 = arith.constant 0 : index
    %c0_0 = arith.constant 0 : index
    %c0_1 = arith.constant 0 : index
    %0 = vector.load %arg2[%c0, %c0_0, %c0_1] : memref<1x2x32xf32, #tpu.memory_space<vmem>>, vector<1x2x32xf32>
    %1 = vector.shape_cast %0 : vector<1x2x32xf32> to vector<2x32xf32>
    %c0_2 = arith.constant 0 : index
    %c0_3 = arith.constant 0 : index
    %c0_4 = arith.constant 0 : index
    %2 = vector.load %arg3[%c0_2, %c0_3, %c0_4] : memref<1x32x256xf32, #tpu.memory_space<vmem>>, vector<1x32x256xf32>
    %3 = vector.shape_cast %2 : vector<1x32x256xf32> to vector<32x256xf32>
    %cst = arith.constant dense<0.000000e+00> : vector<2x256xf32>
    %4 = tpu.matmul %1, %3, %cst {dimension_numbers = #tpu.dot_dimension_numbers<[1], [0], [0], [1], [0, 0, 1, 1], [], []>} : vector<2x32xf32>, vector<32x256xf32>, vector<2x256xf32> -> vector<2x256xf32>
    %c0_5 = arith.constant 0 : index
    %c0_6 = arith.constant 0 : index
    %5 = vector.load %arg4[%c0_5, %c0_6] : memref<2x1xf32, #tpu.memory_space<vmem>>, vector<2x1xf32>
    %6 = vector.broadcast %5 : vector<2x1xf32> to vector<2x256xf32>
    %7 = arith.addf %4, %6 : vector<2x256xf32>
    %c0_7 = arith.constant 0 : index
    %c0_8 = arith.constant 0 : index
    %c0_9 = arith.constant 0 : index
    %8 = vector.load %arg5[%c0_7, %c0_8, %c0_9] : memref<1x2x256xf32, #tpu.memory_space<vmem>>, vector<1x2x256xf32>
    %9 = vector.shape_cast %8 : vector<1x2x256xf32> to vector<2x256xf32>
    %10 = vector.shape_cast %7 : vector<2x256xf32> to vector<1x2x256xf32>
    tpu.vector_store %arg5[%c0_7, %c0_8, %c0_9], %10 {strides = array<i32>} : memref<1x2x256xf32, #tpu.memory_space<vmem>>, vector<1x2x256xf32>,
    return
  }
  func.func @transform_0(%arg0: i32, %arg1: i32) -> (i32, i32, i32) {
    %c0_i32 = arith.constant 0 : i32
    %c0_i32_0 = arith.constant 0 : i32
    %c0_i32_1 = arith.constant 0 : i32
    return %arg0, %c0_i32, %c0_i32_0 : i32, i32, i32
  }
  func.func @transform_1(%arg0: i32, %arg1: i32) -> (i32, i32, i32) {
    %c0_i32 = arith.constant 0 : i32
    %c0_i32_0 = arith.constant 0 : i32
    return %arg0, %c0_i32, %arg1 : i32, i32, i32
  }
  func.func @transform_2(%arg0: i32, %arg1: i32) -> (i32, i32) {
    %c0_i32 = arith.constant 0 : i32
    %c0_i32_0 = arith.constant 0 : i32
    %c0_i32_1 = arith.constant 0 : i32
    return %c0_i32, %c0_i32_0 : i32, i32
  }
  func.func @transform_3(%arg0: i32, %arg1: i32) -> (i32, i32, i32) {
    %c0_i32 = arith.constant 0 : i32
    %c0_i32_0 = arith.constant 0 : i32
    return %arg0, %c0_i32, %arg1 : i32, i32, i32
  }
}

</mosaic_0001>

<llo_original>
// kernel: tpu_custom_call.1
$region0: #{tpu_custom_call.1}
  #allocation0 [shape = 'u32[]', space=smem, size = 0x4, offset = 0x4, fixed_abs, tag = 'smem constant byte address 0x4 - core index']
  #allocation1 [shape = 'u32[144,128]{1,0:T(1,128)}', space=vmem, size = 0x12000, scoped, tag = 'internal scratch']
  %s0 = inlined_call_operand.hbm [shape: f32[2,2,32], index: 0, kind: input, shape index: {}]
  %s1 = inlined_call_operand.hbm [shape: f32[2,32,256], index: 1, kind: input, shape index: {}]
  %s2 = inlined_call_operand.vmem [shape: f32[2,1], index: 2, kind: input, shape index: {}]
  %s3 = inlined_call_operand.hbm [shape: f32[2,2,256], index: 3, kind: output, shape index: {}]
  %s4 = sld [smem:[#allocation0]]
  $region53: #{tpu_custom_call.1} parent=0
    _
  %s6 = ssub.s32 1, %s4
  %s7 = scalar_select 0, %s6, %s4
  $region1: #{tpu_custom_call.1} parent=0
    #allocation2 [shape = 'u8[2048]{0}', space=vmem, size = 0x800, scoped, tag = 'input window, operand 0']
    #allocation3 [shape = 's32[2]{0}', space=sflag, size = 0x8, scoped, tag = 'scoped memory for tpu_custom_call.1']
    #allocation4 [shape = 's32[2]{0}', space=sflag, size = 0x8, scoped, tag = 'scoped memory for tpu_custom_call.1']
    #allocation5 [shape = 'u8[65536]{0}', space=vmem, size = 0x10000, scoped, tag = 'input window, operand 1']
    #allocation6 [shape = 's32[2]{0}', space=sflag, size = 0x8, scoped, tag = 'scoped memory for tpu_custom_call.1']
    #allocation7 [shape = 'u8[4096]{0}', space=vmem, size = 0x1000, scoped, tag = 'output window, operand 0']
    %8 = vsyncpa [#allocation3], 0
    %s9 = scalar_lea.sflag [#allocation3], 1
    %10 = vsyncpa %s9, 0
    %11 = vsyncpa [#allocation6], 0
    %s12 = scalar_lea.sflag [#allocation6], 1
    %13 = vsyncpa %s12, 0
    %14 = vsyncpa [#allocation4], 0
    %s15 = scalar_lea.sflag [#allocation4], 1
    %16 = vsyncpa %s15, 0
    loop: start=0, step=1, limit=4
    $region2: #{tpu_custom_call.1} parent=1 // loop_pre_header
      _
    $region3: #{tpu_custom_call.1} parent=1 // loop_header
      %s18 = sphi 0, %s22
      %p19 = scmp.ge.s32.totalorder %s18, 4
      %s25 = sphi 0, %s37
      %s26 = sphi 0, %s33
      %s27 = sphi 0, %s25
      %s28 = sphi 0, %s26
      %s29 = sphi 0, %s27
      %s30 = sphi 0, %s28
      %s40 = sphi 0, %s42
      %s43 = sphi 0, %s40
      %s44 = sphi 0, %s43
      %s60 = sphi 0, %s44
      %s68 = sphi 0, %s70
      %s71 = sphi 0, %s68
      %s72 = sphi 0, %s71
      %s88 = sphi 0, %s72
      %s92 = sphi 0, %s92
      %s94 = sphi 0, %s92
      %s95 = sphi 0, %s94
      %s109 = sphi 0, %s95
      %s117 = sphi 0, %s119
      %s120 = sphi 0, %s117
      %s121 = sphi 0, %s120
      %s137 = sphi 0, %s121
    $region4: #{tpu_custom_call.1} parent=1 // loop_header_branch
      %21 = sbr.rel (%p19) target = $region8
    $region5: #{tpu_custom_call.1} parent=1 // loop_body
      %s23 = ssub.s32 %s18, 1
      %s24 = ssub.s32 %s18, 2
      %s31 = sadd.s32 1, %s26
      %p32 = scmp.ge.s32.totalorder %s31, 1
      %s33 = scalar_select %p32, 0, %s31
      %s34 = sadd.s32 1, %s25
      %s35 = scalar_select %p32, %s34, %s25
      %p36 = scmp.ge.s32.totalorder %s35, 2
      %s37 = scalar_select %p36, 0, %s35
      %s38 = ssub.s32 %s25, %s37
      %p39 = scmp.eq.s32.totalorder %s38, 0
      %s41 = sadd.s32 %s40, 1
      %s42 = scalar_select %p39, %s40, %s41
      %p45 = pneg %p39
      %p46 = scmp.eq.s32.totalorder %s18, 1
      %p47 = por %p45, %p46
      %p48 = scmp.ne.s32.totalorder %s40, %s43
      %p49 = scmp.eq.s32.totalorder %s18, 0
      %p50 = por %p48, %p49
      %p51 = scmp.ne.s32.totalorder %s40, %s43
      %p52 = scmp.eq.s32.totalorder %s23, 1
      %p53 = por %p51, %p52
      %p54 = scmp.ne.s32.totalorder %s43, %s44
      %p55 = scmp.eq.s32.totalorder %s23, 0
      %p56 = por %p54, %p55
      %p57 = scmp.ne.s32.totalorder %s43, %s44
      %p58 = scmp.eq.s32.totalorder %s24, 1
      %p59 = por %p57, %p58
      %p61 = scmp.ne.s32.totalorder %s44, %s60
      %p62 = scmp.eq.s32.totalorder %s24, 0
      %p63 = por %p61, %p62
      %s64 = ssub.s32 %s25, %s37
      %s65 = ssub.s32 %s26, %s33
      %s66 = sor.u32 %s64, %s65
      %p67 = scmp.eq.s32.totalorder %s66, 0
      %s69 = sadd.s32 %s68, 1
      %s70 = scalar_select %p67, %s68, %s69
      %p73 = pneg %p67
      %p74 = scmp.eq.s32.totalorder %s18, 1
      %p75 = por %p73, %p74
      %p76 = scmp.ne.s32.totalorder %s68, %s71
      %p77 = scmp.eq.s32.totalorder %s18, 0
      %p78 = por %p76, %p77
      %p79 = scmp.ne.s32.totalorder %s68, %s71
      %p80 = scmp.eq.s32.totalorder %s23, 1
      %p81 = por %p79, %p80
      %p82 = scmp.ne.s32.totalorder %s71, %s72
      %p83 = scmp.eq.s32.totalorder %s23, 0
      %p84 = por %p82, %p83
      %p85 = scmp.ne.s32.totalorder %s71, %s72
      %p86 = scmp.eq.s32.totalorder %s24, 1
      %p87 = por %p85, %p86
      %p89 = scmp.ne.s32.totalorder %s72, %s88
      %p90 = scmp.eq.s32.totalorder %s24, 0
      %p91 = por %p89, %p90
      %s93 = sadd.s32 %s92, 1
      %p96 = scmp.eq.s32.totalorder %s18, 1
      %p97 = scmp.ne.s32.totalorder %s92, %s94
      %p98 = scmp.eq.s32.totalorder %s18, 0
      %p99 = por %p97, %p98
      %p100 = scmp.ne.s32.totalorder %s92, %s94
      %p101 = scmp.eq.s32.totalorder %s23, 1
      %p102 = por %p100, %p101
      %p103 = scmp.ne.s32.totalorder %s94, %s95
      %p104 = scmp.eq.s32.totalorder %s23, 0
      %p105 = por %p103, %p104
      %p106 = scmp.ne.s32.totalorder %s94, %s95
      %p107 = scmp.eq.s32.totalorder %s24, 1
      %p108 = por %p106, %p107
      %p110 = scmp.ne.s32.totalorder %s95, %s109
      %p111 = scmp.eq.s32.totalorder %s24, 0
      %p112 = por %p110, %p111
      %s113 = ssub.s32 %s25, %s37
      %s114 = ssub.s32 %s26, %s33
      %s115 = sor.u32 %s113, %s114
      %p116 = scmp.eq.s32.totalorder %s115, 0
      %s118 = sadd.s32 %s117, 1
      %s119 = scalar_select %p116, %s117, %s118
      %p122 = pneg %p116
      %p123 = scmp.eq.s32.totalorder %s18, 1
      %p124 = por %p122, %p123
      %p125 = scmp.ne.s32.totalorder %s117, %s120
      %p126 = scmp.eq.s32.totalorder %s18, 0
      %p127 = por %p125, %p126
      %p128 = scmp.ne.s32.totalorder %s117, %s120
      %p129 = scmp.eq.s32.totalorder %s23, 1
      %p130 = por %p128, %p129
      %p131 = scmp.ne.s32.totalorder %s120, %s121
      %p132 = scmp.eq.s32.totalorder %s23, 0
      %p133 = por %p131, %p132
      %p134 = scmp.ne.s32.totalorder %s120, %s121
      %p135 = scmp.eq.s32.totalorder %s24, 1
      %p136 = por %p134, %p135
      %p138 = scmp.ne.s32.totalorder %s121, %s137
      %p139 = scmp.eq.s32.totalorder %s24, 0
      %p140 = por %p138, %p139
      %p141 = scmp.le.s32.totalorder 1, %s18
      %p142 = scmp.lt.s32.totalorder %s18, 3
      %p143 = pnand %p141, %p142
      %p144 = pneg %p143
      // Predicated region
      $region9: #{tpu_custom_call.1} parent=5 // pred_check
        _
      $region10: #{tpu_custom_call.1} parent=5 // pred_check_branch
        %146 = sbr.rel (%p143) target = $region12
      $region11: #{tpu_custom_call.1} parent=5 // pred_region
        %s147 = ssub.s32 %s18, 1
        // Predicated region
        $region13: #{tpu_custom_call.1} parent=11 // pred_check
          %p148 = pneg %p105
        $region14: #{tpu_custom_call.1} parent=11 // pred_check_branch
          %150 = sbr.rel (%p148) target = $region16
        $region15: #{tpu_custom_call.1} parent=11 // pred_region
          _
        $region16: #{tpu_custom_call.1} parent=11 // pred_fallthru
          _
      $region12: #{tpu_custom_call.1} parent=5 // pred_fallthru
        _
      %p151 = scmp.lt.s32.totalorder %s18, 2
      // Predicated region
      $region17: #{tpu_custom_call.1} parent=5 // pred_check
        %p152 = pneg %p151
      $region18: #{tpu_custom_call.1} parent=5 // pred_check_branch
        %154 = sbr.rel (%p152) target = $region20
      $region19: #{tpu_custom_call.1} parent=5 // pred_region
        // Predicated region
        $region21: #{tpu_custom_call.1} parent=19 // pred_check
          %p155 = pneg %p50
        $region22: #{tpu_custom_call.1} parent=19 // pred_check_branch
          %157 = sbr.rel (%p155) target = $region24
        $region23: #{tpu_custom_call.1} parent=19 // pred_region
          %s158 = sand.u32 %s40, 1
          %s159 = scalar_lea.sflag [#allocation3], %s158
          %s160 = sand.u32 %s40, 1
          %s161 = smul.addr %s160, 2
          %s162 = scalar_lea.vmem [#allocation2], %s161
          %s164 = ssub.s32 32, 32
          %165 = vsyncadd %s159, %s164
          %s166 = smul.addr %s25, 32
          %s167 = scalar_lea.hbm %s0, %s166
          %s169 = sshll.u32 %s162, 4
          %s170 = int_to_ptr.vmem [resolvable:$true] %s169
          %172 = dma.hbm_to_vmem [thread:$0]  %s167, 32, %s170, %s159
        $region24: #{tpu_custom_call.1} parent=19 // pred_fallthru
          _
        // Predicated region
        $region25: #{tpu_custom_call.1} parent=19 // pred_check
          %p173 = pneg %p78
        $region26: #{tpu_custom_call.1} parent=19 // pred_check_branch
          %175 = sbr.rel (%p173) target = $region28
        $region27: #{tpu_custom_call.1} parent=19 // pred_region
          %s176 = sand.u32 %s68, 1
          %s177 = scalar_lea.sflag [#allocation6], %s176
          %s178 = sand.u32 %s68, 1
          %s179 = smul.addr %s178, 64
          %s180 = scalar_lea.vmem [#allocation5], %s179
          %s181 = smul.u32 2, %s26
          %s183 = ssub.s32 1024, 1024
          %184 = vsyncadd %s177, %s183
          %s185 = smul.addr %s25, 8
          %s186 = sadd.s32 %s181, %s185
          %s187 = smul.addr %s186, 128
          %s188 = scalar_lea.hbm %s1, %s187
          %s189 = sshll.u32 %s180, 4
          %s190 = int_to_ptr.vmem [resolvable:$true] %s189
          %195 = dma.hbm_to_vmem [thread:$0]  %s188, 1024, %s190, %s177, 256, 256, 16
        $region28: #{tpu_custom_call.1} parent=19 // pred_fallthru
          _
      $region20: #{tpu_custom_call.1} parent=5 // pred_fallthru
        _
      %p196 = scmp.le.s32.totalorder 1, %s18
      %p197 = scmp.lt.s32.totalorder %s18, 3
      %p198 = pnand %p196, %p197
      %p199 = pneg %p198
      // Predicated region
      $region29: #{tpu_custom_call.1} parent=5 // pred_check
        _
      $region30: #{tpu_custom_call.1} parent=5 // pred_check_branch
        %201 = sbr.rel (%p198) target = $region32
      $region31: #{tpu_custom_call.1} parent=5 // pred_region
        %s202 = ssub.s32 %s18, 1
        %s203 = sand.u32 %s43, 1
        %s204 = scalar_lea.sflag [#allocation3], %s203
        %s205 = sand.u32 %s43, 1
        %s206 = smul.addr %s205, 2
        %s207 = scalar_lea.vmem [#allocation2], %s206
        // Predicated region
        $region33: #{tpu_custom_call.1} parent=31 // pred_check
          %p208 = pneg %p56
        $region34: #{tpu_custom_call.1} parent=31 // pred_check_branch
          %210 = sbr.rel (%p208) target = $region36
        $region35: #{tpu_custom_call.1} parent=31 // pred_region
          %211 = dma.done %s204, 32
        $region36: #{tpu_custom_call.1} parent=31 // pred_fallthru
          _
        %s212 = sand.u32 %s71, 1
        %s213 = scalar_lea.sflag [#allocation6], %s212
        %s214 = sand.u32 %s71, 1
        %s215 = smul.addr %s214, 64
        %s216 = scalar_lea.vmem [#allocation5], %s215
        // Predicated region
        $region37: #{tpu_custom_call.1} parent=31 // pred_check
          %p217 = pneg %p84
        $region38: #{tpu_custom_call.1} parent=31 // pred_check_branch
          %219 = sbr.rel (%p217) target = $region40
        $region39: #{tpu_custom_call.1} parent=31 // pred_region
          %220 = dma.done %s213, 1024
        $region40: #{tpu_custom_call.1} parent=31 // pred_fallthru
          _
        %s221 = sand.u32 %s43, 1
        %s222 = scalar_lea.sflag [#allocation3], %s221
        %s223 = sand.u32 %s43, 1
        %s224 = smul.addr %s223, 2
        %s225 = scalar_lea.vmem [#allocation2], %s224
        %p226 = pneg %p56
        %p227 = pneg %p53
        %s228 = sand.u32 %s71, 1
        %s229 = scalar_lea.sflag [#allocation6], %s228
        %s230 = sand.u32 %s71, 1
        %s231 = smul.addr %s230, 64
        %s232 = scalar_lea.vmem [#allocation5], %s231
        %p233 = pneg %p84
        %p234 = pneg %p81
        %p235 = pneg %p105
        %p236 = pneg %p102
        %p237 = pneg %p133
        %p238 = pneg %p130
        %s239 = sand.u32 %s120, 1
        %s240 = scalar_lea.sflag [#allocation4], %s239
        %s241 = sand.u32 %s120, 1
        %s242 = smul.addr %s241, 4
        %s243 = scalar_lea.vmem [#allocation7], %s242
        %s244 = smul.u32 2, %s28
        %s245 = smul.u32 2, %s28
        %v246 = vld [vmem:[%s207] sm:$0x3]
        %v247 = vld [vmem:[%s216] sm:$0xff]
        %v248 = vld [vmem:[%s216 + $0x8] sm:$0xff]
        %v249 = vld [vmem:[%s216 + $0x10] sm:$0xff]
        %v250 = vld [vmem:[%s216 + $0x18] sm:$0xff]
        %v251 = vld [vmem:[%s216 + $0x20] sm:$0xff]
        %v252 = vld [vmem:[%s216 + $0x28] sm:$0xff]
        %v253 = vld [vmem:[%s216 + $0x30] sm:$0xff]
        %v254 = vld [vmem:[%s216 + $0x38] sm:$0xff]
        %v255 = vld [vmem:[%s2] sm:$0x3]
        %257 = vset.pattern.permute.xlu0 0
        %258 = vperm.xlu0 %257, %v255
        %v259 = vpop.permute.xlu0 %258
        %vm261 = vcmask 261120
        %v263 = vsel %vm261, %v246, 0
        %265 = vmatprep.subr.mxu0 %v248
        %266 = vmatpush1.msra.mxu0 %v247
        %267 = vmatprep.subr.mxu0 %v250
        %268 = vmatpush1.msra.mxu0 %v249
        %269 = vmatprep.subr.mxu0 %v252
        %270 = vmatpush1.msra.mxu0 %v251
        %271 = vmatprep.subr.mxu0 %v254
        %272 = vmatpush1.msra.mxu0 %v253
        %273 = vmatprep.subr.mxu0 0.0
        %274 = vmatpush1.msra.mxu0 0.0
        %275 = vmatprep.subr.mxu0 0.0
        %276 = vmatpush1.msra.mxu0 0.0
        %277 = vmatprep.subr.mxu0 0.0
        %278 = vmatpush1.msra.mxu0 0.0
        %279 = vmatprep.subr.mxu0 0.0
        %280 = vmatpush1.msra.mxu0 0.0
        %281 = vmatprep.subr.mxu0 0.0
        %282 = vmatpush1.msra.mxu0 0.0
        %283 = vmatprep.subr.mxu0 0.0
        %284 = vmatpush1.msra.mxu0 0.0
        %285 = vmatprep.subr.mxu0 0.0
        %286 = vmatpush1.msra.mxu0 0.0
        %287 = vmatprep.subr.mxu0 0.0
        %288 = vmatpush1.msra.mxu0 0.0
        %289 = vmatprep.subr.mxu0 0.0
        %290 = vmatpush1.msra.mxu0 0.0
        %291 = vmatprep.subr.mxu0 0.0
        %292 = vmatpush1.msra.mxu0 0.0
        %293 = vmatprep.subr.mxu0 0.0
        %294 = vmatpush1.msra.mxu0 0.0
        %295 = vmatprep.subr.mxu0 0.0
        %296 = vmatpush1.msra.mxu0 0.0
        %297 = vmatprep.subr.mxu0 0.0
        %298 = vmatpush1.msra.mxu0 0.0
        %299 = vmatprep.subr.mxu0 0.0
        %300 = vmatpush1.msra.mxu0 0.0
        %301 = vmatprep.subr.mxu0 0.0
        %302 = vmatpush1.msra.mxu0 0.0
        %303 = vmatprep.subr.mxu0 0.0
        %304 = vmatpush1.msra.mxu0 0.0
        %305 = vmatprep.subr.mxu0 0.0
        %306 = vmatpush1.msra.mxu0 0.0
        %307 = vmatprep.subr.mxu0 0.0
        %308 = vmatpush1.msra.mxu0 0.0
        %309 = vmatprep.subr.mxu0 0.0
        %310 = vmatpush1.msra.mxu0 0.0
        %311 = vmatprep.subr.mxu0 0.0
        %312 = vmatpush1.msra.mxu0 0.0
        %313 = vmatprep.subr.mxu0 0.0
        %314 = vmatpush1.msra.mxu0 0.0
        %315 = vmatprep.subr.mxu0 0.0
        %316 = vmatpush1.msra.mxu0 0.0
        %317 = vmatprep.subr.mxu0 0.0
        %318 = vmatpush1.msra.mxu0 0.0
        %319 = vmatprep.subr.mxu0 0.0
        %320 = vmatpush1.msra.mxu0 0.0
        %321 = vmatprep.subr.mxu0 0.0
        %322 = vmatpush1.msra.mxu0 0.0
        %323 = vmatprep.subr.mxu0 0.0
        %324 = vmatpush1.msra.mxu0 0.0
        %325 = vmatprep.subr.mxu0 0.0
        %326 = vmatpush1.msra.mxu0 0.0
        %327 = vmatprep.subr.mxu0 0.0
        %328 = vmatpush1.msra.mxu0 0.0
        %329 = vmatprep.mubr.f32.mxu0 0.0
        %330 = vmatmul.mubr.f32.gmra.mrb[0].mxu0 %v263
        %v331 = vpop.f32.mrb[0].mxu0
        %v332 = vadd.f32 %v259, %v331
        %v333 = vpop.f32.mrb[0].mxu0
        %v334 = vadd.f32 %v259, %v333
        %335 = vdwg.mxu0
        %v338 = vcombine.low %v332, %v334
        %v340 = vunpack.c.l.s4 1983009808
        %v341 = vunpack.c.0.s8 %v340
        %v342 = vlaneseq
        %v343 = vshrl.u32 %v342, 7
        %v344 = vsub.s32 %v341, %v343
        %v345 = vrot.slane %v338, %v344
        %347 = vst [vmem:[%s243] sm:$0xf] %v345
        %s348 = sand.u32 %s120, 1
        %s349 = scalar_lea.sflag [#allocation4], %s348
        %s350 = sand.u32 %s120, 1
        %s351 = smul.addr %s350, 4
        %s352 = scalar_lea.vmem [#allocation7], %s351
        // Predicated region
        $region41: #{tpu_custom_call.1} parent=31 // pred_check
          %p353 = pneg %p130
        $region42: #{tpu_custom_call.1} parent=31 // pred_check_branch
          %355 = sbr.rel (%p353) target = $region44
        $region43: #{tpu_custom_call.1} parent=31 // pred_region
          %s356 = smul.u32 2, %s28
          %s358 = ssub.s32 64, 64
          %359 = vsyncadd %s349, %s358
          %s360 = smul.addr %s27, 2
          %s361 = sadd.s32 %s356, %s360
          %s362 = smul.addr %s361, 32
          %s363 = scalar_lea.hbm %s3, %s362
          %s365 = sshll.u32 %s352, 4
          %s366 = int_to_ptr.vmem [resolvable:$true] %s365
          %368 = dma.vmem_to_hbm [thread:$0]  %s366, 64, %s363, %s349
        $region44: #{tpu_custom_call.1} parent=31 // pred_fallthru
          _
      $region32: #{tpu_custom_call.1} parent=5 // pred_fallthru
        _
      %p369 = scmp.le.s32.totalorder 2, %s18
      // Predicated region
      $region45: #{tpu_custom_call.1} parent=5 // pred_check
        %p370 = pneg %p369
      $region46: #{tpu_custom_call.1} parent=5 // pred_check_branch
        %372 = sbr.rel (%p370) target = $region48
      $region47: #{tpu_custom_call.1} parent=5 // pred_region
        %s373 = ssub.s32 %s18, 2
        // Predicated region
        $region49: #{tpu_custom_call.1} parent=47 // pred_check
          %p374 = pneg %p136
        $region50: #{tpu_custom_call.1} parent=47 // pred_check_branch
          %376 = sbr.rel (%p374) target = $region52
        $region51: #{tpu_custom_call.1} parent=47 // pred_region
          %s377 = sand.u32 %s121, 1
          %s378 = scalar_lea.sflag [#allocation4], %s377
          %s379 = sand.u32 %s121, 1
          %s380 = smul.addr %s379, 4
          %s381 = scalar_lea.vmem [#allocation7], %s380
          %382 = dma.done %s378, 64
        $region52: #{tpu_custom_call.1} parent=47 // pred_fallthru
          _
      $region48: #{tpu_custom_call.1} parent=5 // pred_fallthru
        _
    $region6: #{tpu_custom_call.1} parent=1 // loop_footer
      %s22 = sadd.s32 1, %s18
    $region7: #{tpu_custom_call.1} parent=1 // loop_footer_branch
      %17 = sbr.rel target = $region3
    $region8: #{tpu_custom_call.1} parent=1 // loop_exit
      _
    %383 = vsyncpa [#allocation3], 1
    %s384 = scalar_lea.sflag [#allocation3], 1
    %385 = vsyncpa %s384, 1
    %386 = vsyncpa [#allocation6], 1
    %s387 = scalar_lea.sflag [#allocation6], 1
    %388 = vsyncpa %s387, 1
    %389 = vsyncpa [#allocation4], 1
    %s390 = scalar_lea.sflag [#allocation4], 1
    %391 = vsyncpa %s390, 1

</llo_original>
